<compile_context>
chip_gen: v6e
topology: v6e:2x2x1
jax: 0.10.0
libtpu: 0.0.40
codegen_flags: <defaults>
</compile_context>

<pallas_src>
import functools

import jax
import jax.numpy as jnp
from jax import lax
from jax.experimental import pallas as pl
from jax.experimental.pallas import tpu as pltpu

_LANES = 128
_SUBLANES = 8
_SUB_ROWS = 64          # rows folded per fori_loop iteration (8 vregs / operand)


# ----------------------------------------------------------------------------
# Kernel: fused |SR - HR| -> per-core partial sums (folded onto an (8,128) slab)
# ----------------------------------------------------------------------------
def _l1_partial_kernel(sr_ref, hr_ref, out_ref, *, tile_rows, sub_rows,
                       rows_total, blocks_per_split, needs_mask):
    # sr_ref / hr_ref : (tile_rows, 128) lane-dense blocks (native dtype)
    # out_ref         : (1, 8, 128) f32 block, resident across the inner grid axis
    #                   (index map ignores it) -> acts as this core's accumulator.
    i = pl.program_id(1)

    @pl.when(i == 0)
    def _init():
        out_ref[...] = jnp.zeros_like(out_ref)

    if needs_mask:
        # Rows of this block that actually exist in the input.  It is <= 0 for the
        # duplicated (clamped) block on the split axis and < tile_rows for the
        # ragged tail block; anything past `valid_rows` is undefined data from the
        # partial DMA and must be zeroed before accumulation.
        global_block = pl.program_id(0) * blocks_per_split + i
        valid_rows = rows_total - global_block * tile_rows

    n_sub = tile_rows // sub_rows

    def body(j, carry):
        r0 = pl.multiple_of(j * sub_rows, sub_rows)
        d = jnp.abs(sr_ref[pl.ds(r0, sub_rows), :].astype(jnp.float32)
                    - hr_ref[pl.ds(r0, sub_rows), :].astype(jnp.float32))
        if needs_mask:
            row_id = lax.broadcasted_iota(jnp.int32, d.shape, 0) + r0
            d = jnp.where(row_id < valid_rows, d, 0.0)
        # Fold onto the (8, 128) accumulator slab: per-lane VPU adds only,
        # no cross-lane traffic inside the kernel.
        out_ref[0] += jnp.sum(
            d.reshape(sub_rows // _SUBLANES, _SUBLANES, _LANES), axis=0)
        return carry

    lax.fori_loop(0, n_sub, body, 0)


# ----------------------------------------------------------------------------
# Tile selection (per generation)
# ----------------------------------------------------------------------------
def _default_tile_rows():
    """Pick a row-tile per TPU generation.

    Bigger tiles amortize the ~0.35us per-grid-step overhead.  v7x (identified by
    its 64 MiB per-core VMEM) has ~3.2 TB/s HBM per core, so it wants ~8192-row
    tiles (16 MiB of double-buffered f32 input blocks, within its 32 MiB scoped
    VMEM); v5e/v6e already reach roofline at 4096 rows (8 MiB of buffers).
    """
    try:
        info = pltpu.get_tpu_info()
        vmem = int(getattr(info, "vmem_capacity_bytes", 128 * 1024 * 1024))
        return 8192 if vmem <= 80 * 1024 * 1024 else 4096
    except Exception:
        return 4096


# ----------------------------------------------------------------------------
# Wrapper
# ----------------------------------------------------------------------------
def l1_loss_pallas(sr, hr, *, tile_rows=None, num_splits=2,
                   min_pallas_elems=_SUBLANES * _LANES):
    """mean(|sr - hr|) over all elements (== torch.nn.L1Loss()(sr, hr)).

    Inputs are consumed in their native dtype (do NOT upcast bf16 outside -- the
    in-kernel per-sub-chunk cast to f32 preserves precision while halving HBM
    reads).  For genuinely tiny tensors pass a larger `min_pallas_elems` (the plain
    jnp path wins below ~a few MiB; here the default only guards the structural
    minimum so the kernel stays exercised).
    """
    assert sr.shape == hr.shape, "SR and HR must have identical shapes"
    n = 1
    for d in sr.shape:
        n *= int(d)
    if n == 0:
        return jnp.float32(0.0)
    if n < max(int(min_pallas_elems), _SUBLANES * _LANES):
        # Launch/dispatch overhead dominates; a custom kernel cannot win here.
        return jnp.mean(jnp.abs(sr.astype(jnp.float32) - hr.astype(jnp.float32)))

    # Lane-dense (rows, 128) view.  When n % 128 == 0 this is a free reshape of the
    # contiguous input -- no padding, no extra HBM copy; ragged row-blocks are
    # masked inside the kernel instead.
    if n % _LANES == 0:
        rows = n // _LANES
        sr2 = sr.reshape(rows, _LANES)
        hr2 = hr.reshape(rows, _LANES)
    else:
        # TODO(synk): avoid this HBM copy as well (element-masked 1-D blocks);
        # |0-0| = 0 keeps the padded path exact and the mean divides by the true n.
        rows = pl.cdiv(n, _LANES)
        pad = rows * _LANES - n
        sr2 = jnp.pad(sr.reshape(-1), (0, pad)).reshape(rows, _LANES)
        hr2 = jnp.pad(hr.reshape(-1), (0, pad)).reshape(rows, _LANES)

    if tile_rows is None:
        tile_rows = _default_tile_rows()
    tr = min(int(tile_rows), -(-rows // _SUBLANES) * _SUBLANES)
    tr = max(_SUBLANES, -(-tr // _SUBLANES) * _SUBLANES)       # multiple of 8

    nb = pl.cdiv(rows, tr)                       # total row-blocks
    splits = int(num_splits) if nb >= int(num_splits) > 1 else 1
    inner = pl.cdiv(nb, splits)                  # row-blocks per split/core
    needs_mask = (rows % tr != 0) or (splits * inner != nb)
    sub = _SUB_ROWS if tr % _SUB_ROWS == 0 else _SUBLANES
    last_block = nb - 1

    def in_map(c, i):
        # Clamp so the duplicated trailing block (when nb % splits != 0) still DMAs
        # in-bounds data; the kernel's row mask zeroes its contribution.
        return (jnp.minimum(c * inner + i, last_block), 0)

    kernel = functools.partial(
        _l1_partial_kernel, tile_rows=tr, sub_rows=sub, rows_total=rows,
        blocks_per_split=inner, needs_mask=needs_mask)

    itemsize = jnp.dtype(sr.dtype).itemsize
    partials = pl.pallas_call(
        kernel,
        out_shape=jax.ShapeDtypeStruct((splits, _SUBLANES, _LANES), jnp.float32),
        grid=(splits, inner),
        in_specs=[pl.BlockSpec((tr, _LANES), in_map),
                  pl.BlockSpec((tr, _LANES), in_map)],
        out_specs=pl.BlockSpec((1, _SUBLANES, _LANES), lambda c, i: (c, 0, 0)),
        compiler_params=pltpu.CompilerParams(
            dimension_semantics=("parallel", "arbitrary"),
            vmem_limit_bytes=32 * 1024 * 1024),
        cost_estimate=pl.CostEstimate(
            flops=3 * n, transcendentals=0,
            bytes_accessed=2 * n * itemsize + splits * _SUBLANES * _LANES * 4),
    )(sr2, hr2)

    # Combine the per-core partial sums and apply the mean scale (tiny XLA op).
    return (jnp.sum(partials) / n).astype(jnp.float32)


class get_loss:
    """Pallas/JAX equivalent of model/SR/LF_InterNet.py::get_loss (L1Loss, mean)."""

    def __init__(self, args=None):
        del args  # matches the torch module signature; unused

    def __call__(self, SR, HR, criterion_data=()):
        del criterion_data  # matches the torch forward signature; unused
        return l1_loss_pallas(SR, HR)


# ----------------------------------------------------------------------------
if __name__ == "__main__":
    keys = jax.random.split(jax.random.PRNGKey(0), 8)
    loss_mod = get_loss(args=None)
    loss_jit = jax.jit(lambda a, b: loss_mod(a, b))

    # 1) Small SR-sized tensors (B,C,H,W) = (2,4,16,16): single block, no masking.
    SR = jax.random.normal(keys[0], (2, 4, 16, 16), jnp.float32)
    HR = jax.random.normal(keys[1], (2, 4, 16, 16), jnp.float32)
    loss = loss_jit(SR, HR)
    jax.block_until_ready(loss)
    ref = jnp.mean(jnp.abs(SR - HR))
    assert loss.shape == () and loss.dtype == jnp.float32
    assert jnp.allclose(loss, ref, rtol=1e-5, atol=1e-6), (loss, ref)

    # 2) Ragged row count (rows=195) with a forced small tile: 2 splits x 2 blocks,
    #    exercising the in-kernel row masking and the dual-core grid layout.
    SR2 = jax.random.normal(keys[2], (3, 4, 40, 52), jnp.float32)
    HR2 = jax.random.normal(keys[3], (3, 4, 40, 52), jnp.float32)
    loss2 = jax.jit(functools.partial(l1_loss_pallas, tile_rows=64))(SR2, HR2)
    jax.block_until_ready(loss2)
    ref2 = jnp.mean(jnp.abs(SR2 - HR2))
    assert jnp.allclose(loss2, ref2, rtol=1e-5, atol=1e-6), (loss2, ref2)

    # 3) bf16 inputs (native-dtype HBM reads, f32 accumulate) with an odd block
    #    count: the clamped duplicate block on the split axis must be fully masked.
    SR3 = jax.random.normal(keys[4], (2, 4, 48, 64), jnp.float32).astype(jnp.bfloat16)
    HR3 = jax.random.normal(keys[5], (2, 4, 48, 64), jnp.float32).astype(jnp.bfloat16)
    loss3 = jax.jit(functools.partial(l1_loss_pallas, tile_rows=64))(SR3, HR3)
    jax.block_until_ready(loss3)
    ref3 = jnp.mean(jnp.abs(SR3.astype(jnp.float32) - HR3.astype(jnp.float32)))
    assert jnp.allclose(loss3, ref3, rtol=1e-4, atol=1e-6), (loss3, ref3)

    # 4) Larger input on the default (per-generation) tile size / split count.
    SR4 = jax.random.normal(keys[6], (4, 1, 512, 512), jnp.float32)
    HR4 = jax.random.normal(keys[7], (4, 1, 512, 512), jnp.float32)
    loss4 = jax.jit(l1_loss_pallas)(SR4, HR4)
    jax.block_until_ready(loss4)
    ref4 = jnp.mean(jnp.abs(SR4 - HR4))
    assert jnp.allclose(loss4, ref4, rtol=1e-4, atol=1e-6), (loss4, ref4)

    print("KERNEL_OK")
</pallas_src>

<mosaic_0001>
module attributes {stable_mosaic.version = 11 : i64} {
  func.func @_l1_partial_kernel(%arg0: i32, %arg1: i32, %arg2: memref<16x128xf32, #tpu.memory_space<vmem>>, %arg3: memref<16x128xf32, #tpu.memory_space<vmem>>, %arg4: memref<1x8x128xf32, #tpu.memory_space<vmem>>) attributes {dimension_semantics = [#tpu.dimension_semantics<parallel>, #tpu.dimension_semantics<arbitrary>], iteration_bounds = array<i64: 1, 1>, scalar_prefetch = 0 : i64, scratch_operands = 0 : i64, tpu.core_type = #tpu.core_type<tc>, window_params = [{transform_indices = @transform_0, window_bounds = array<i64: 16, 128>}, {transform_indices = @transform_1, window_bounds = array<i64: 16, 128>}, {transform_indices = @transform_2, window_bounds = array<i64: 1, 8, 128>}]} {
    %c0_i32 = arith.constant 0 : i32
    %0 = arith.cmpi eq, %arg1, %c0_i32 : i32
    %1 = arith.extui %0 : i1 to i32
    %c0_i32_0 = arith.constant 0 : i32
    %2 = arith.cmpi ne, %1, %c0_i32_0 : i32
    scf.if %2 {
      %cst = arith.constant 0.000000e+00 : f32
      %4 = vector.broadcast %cst : f32 to vector<1x8x128xf32>
      %c0 = arith.constant 0 : index
      %c0_3 = arith.constant 0 : index
      %c0_4 = arith.constant 0 : index
      %5 = vector.load %arg4[%c0, %c0_3, %c0_4] : memref<1x8x128xf32, #tpu.memory_space<vmem>>, vector<1x8x128xf32>
      tpu.vector_store %arg4[%c0, %c0_3, %c0_4], %4 {strides = array<i32>} : memref<1x8x128xf32, #tpu.memory_space<vmem>>, vector<1x8x128xf32>,
    } else {
    }
    %c0_i32_1 = arith.constant 0 : i32
    %c2_i32 = arith.constant 2 : i32
    %3 = arith.addi %c0_i32_1, %c2_i32 : i32
    %c1_i32 = arith.constant 1 : i32
    scf.for %arg5 = %c0_i32_1 to %3 step %c1_i32  : i32 {
      %c8_i32 = arith.constant 8 : i32
      %4 = arith.muli %arg5, %c8_i32 : i32
      %5 = tpu.assume_multiple %4, 8 : i32
      %6 = arith.index_cast %5 : i32 to index
      %c0 = arith.constant 0 : index
      %7 = vector.load %arg2[%6, %c0] : memref<16x128xf32, #tpu.memory_space<vmem>>, vector<8x128xf32>
      %8 = arith.index_cast %5 : i32 to index
      %c0_3 = arith.constant 0 : index
      %9 = vector.load %arg3[%8, %c0_3] : memref<16x128xf32, #tpu.memory_space<vmem>>, vector<8x128xf32>
      %10 = arith.subf %7, %9 : vector<8x128xf32>
      %11 = math.absf %10 : vector<8x128xf32>
      %c0_4 = arith.constant 0 : index
      %c0_5 = arith.constant 0 : index
      %c0_6 = arith.constant 0 : index
      %12 = vector.load %arg4[%c0_4, %c0_5, %c0_6] : memref<1x8x128xf32, #tpu.memory_space<vmem>>, vector<1x8x128xf32>
      %13 = vector.shape_cast %12 : vector<1x8x128xf32> to vector<8x128xf32>
      %14 = vector.shape_cast %11 : vector<8x128xf32> to vector<1x8x128xf32>
      %cst = arith.constant dense<0.000000e+00> : vector<8x128xf32>
      %15 = vector.multi_reduction <add>, %14, %cst [0] : vector<1x8x128xf32> to vector<8x128xf32>
      %16 = arith.addf %13, %15 : vector<8x128xf32>
      %c0_7 = arith.constant 0 : index
      %c0_8 = arith.constant 0 : index
      %c0_9 = arith.constant 0 : index
      %17 = vector.load %arg4[%c0_7, %c0_8, %c0_9] : memref<1x8x128xf32, #tpu.memory_space<vmem>>, vector<1x8x128xf32>
      %18 = vector.shape_cast %17 : vector<1x8x128xf32> to vector<8x128xf32>
      %19 = vector.shape_cast %16 : vector<8x128xf32> to vector<1x8x128xf32>
      tpu.vector_store %arg4[%c0_7, %c0_8, %c0_9], %19 {strides = array<i32>} : memref<1x8x128xf32, #tpu.memory_space<vmem>>, vector<1x8x128xf32>,
    }
    %c2_i32_2 = arith.constant 2 : i32
    return
  }
  func.func @transform_0(%arg0: i32, %arg1: i32) -> (i32, i32) {
    %c1_i32 = arith.constant 1 : i32
    %0 = arith.muli %arg0, %c1_i32 : i32
    %1 = arith.addi %0, %arg1 : i32
    %c0_i32 = arith.constant 0 : i32
    %2 = arith.minsi %1, %c0_i32 : i32
    %c0_i32_0 = arith.constant 0 : i32
    %c0_i32_1 = arith.constant 0 : i32
    return %2, %c0_i32_0 : i32, i32
  }
  func.func @transform_1(%arg0: i32, %arg1: i32) -> (i32, i32) {
    %c1_i32 = arith.constant 1 : i32
    %0 = arith.muli %arg0, %c1_i32 : i32
    %1 = arith.addi %0, %arg1 : i32
    %c0_i32 = arith.constant 0 : i32
    %2 = arith.minsi %1, %c0_i32 : i32
    %c0_i32_0 = arith.constant 0 : i32
    %c0_i32_1 = arith.constant 0 : i32
    return %2, %c0_i32_0 : i32, i32
  }
  func.func @transform_2(%arg0: i32, %arg1: i32) -> (i32, i32, i32) {
    %c0_i32 = arith.constant 0 : i32
    %c0_i32_0 = arith.constant 0 : i32
    %c0_i32_1 = arith.constant 0 : i32
    return %arg0, %c0_i32, %c0_i32_0 : i32, i32, i32
  }
}

</mosaic_0001>

<llo_original>
// kernel: _lambda_.1
$region0: #{_lambda_.1}
  #allocation0 [shape = 'u32[]', space=smem, size = 0x4, offset = 0x4, fixed_abs, tag = 'smem constant byte address 0x4 - core index']
  #allocation1 [shape = 'u32[144,128]{1,0:T(1,128)}', space=vmem, size = 0x12000, scoped, tag = 'internal scratch']
  %s0 = inlined_call_operand.vmem [shape: f32[16,128], index: 0, kind: input, shape index: {}]
  %s1 = inlined_call_operand.vmem [shape: f32[16,128], index: 1, kind: input, shape index: {}]
  %s2 = inlined_call_operand.vmem [shape: f32[1,8,128], index: 2, kind: output, shape index: {}]
  %s3 = sld [smem:[#allocation0]]
  $region29: #{_lambda_.1} parent=0
    _
  %s5 = ssub.s32 1, %s3
  %s6 = scalar_select 0, %s5, %s3
  // Predicated region
  $region2: #{_lambda_.1} parent=0 // pred_check
    _
  $region3: #{_lambda_.1} parent=0 // pred_check_branch
    %8 = sbr.rel (0) target = $region5
  $region4: #{_lambda_.1} parent=0 // pred_region
    %s9 = sadd.s32 0, 0
    %p10 = scmp.lt.s32.totalorder %s9, 0
    %s11 = scalar_select %p10, %s9, 0
    %s12 = smul.u32 2, %s11
    %p13 = scmp.lt.s32.totalorder %s12, 1
    %s14 = scalar_select %p13, %s12, 1
    %s15 = smul.addr %s14, 8
    %s16 = scalar_lea.vmem %s0, %s15
    %s17 = sadd.s32 0, 0
    %p18 = scmp.lt.s32.totalorder %s17, 0
    %s19 = scalar_select %p18, %s17, 0
    %s20 = smul.u32 2, %s19
  $region5: #{_lambda_.1} parent=0 // pred_fallthru
    _
  // Predicated region
  $region6: #{_lambda_.1} parent=0 // pred_check
    _
  $region7: #{_lambda_.1} parent=0 // pred_check_branch
    %22 = sbr.rel (0) target = $region9
  $region8: #{_lambda_.1} parent=0 // pred_region
    %s23 = sadd.s32 0, 0
    %p24 = scmp.lt.s32.totalorder %s23, 0
    %s25 = scalar_select %p24, %s23, 0
    %s26 = smul.u32 2, %s25
    %p27 = scmp.lt.s32.totalorder %s26, 1
    %s28 = scalar_select %p27, %s26, 1
    %s29 = smul.addr %s28, 8
    %s30 = scalar_lea.vmem %s1, %s29
    %s31 = sadd.s32 0, 0
    %p32 = scmp.lt.s32.totalorder %s31, 0
    %s33 = scalar_select %p32, %s31, 0
    %s34 = smul.u32 2, %s33
  $region9: #{_lambda_.1} parent=0 // pred_fallthru
    _
  %s35 = sadd.s32 0, 0
  %p36 = scmp.lt.s32.totalorder %s35, 0
  %s37 = scalar_select %p36, %s35, 0
  %s38 = smul.u32 2, %s37
  %p39 = scmp.lt.s32.totalorder %s38, 1
  %s40 = scalar_select %p39, %s38, 1
  %s41 = smul.addr %s40, 8
  %s42 = scalar_lea.vmem %s0, %s41
  %s43 = sadd.s32 0, 0
  %p44 = scmp.lt.s32.totalorder %s43, 0
  %s45 = scalar_select %p44, %s43, 0
  %s46 = smul.u32 2, %s45
  %p47 = scmp.lt.s32.totalorder %s46, 1
  %s48 = scalar_select %p47, %s46, 1
  %s49 = smul.addr %s48, 8
  %s50 = scalar_lea.vmem %s1, %s49
  %s51 = sadd.s32 0, 0
  %p52 = scmp.lt.s32.totalorder %s51, 0
  %s53 = scalar_select %p52, %s51, 0
  %s54 = smul.u32 2, %s53
  %p55 = scmp.lt.s32.totalorder %s54, 1
  %s56 = scalar_select %p55, %s54, 1
  %s57 = smul.addr %s56, 8
  %s58 = scalar_lea.vmem %s0, %s57
  %s59 = sadd.s32 0, 0
  %p60 = scmp.lt.s32.totalorder %s59, 0
  %s61 = scalar_select %p60, %s59, 0
  %s62 = smul.u32 2, %s61
  %s63 = sadd.s32 0, 0
  %p64 = scmp.lt.s32.totalorder %s63, 0
  %s65 = scalar_select %p64, %s63, 0
  %s66 = smul.u32 2, %s65
  %p67 = scmp.lt.s32.totalorder %s66, 1
  %s68 = scalar_select %p67, %s66, 1
  %s69 = smul.addr %s68, 8
  %s70 = scalar_lea.vmem %s1, %s69
  %s71 = sadd.s32 0, 0
  %p72 = scmp.lt.s32.totalorder %s71, 0
  %s73 = scalar_select %p72, %s71, 0
  %s74 = smul.u32 2, %s73
  %p75 = scmp.eq.s32.totalorder 0, 0
  // Predicated region
  $region10: #{_lambda_.1} parent=0 // pred_check
    %p76 = pneg %p75
  $region11: #{_lambda_.1} parent=0 // pred_check_branch
    %78 = sbr.rel (%p76) target = $region13
  $region12: #{_lambda_.1} parent=0 // pred_region
    %79 = vst [vmem:[%s2] sm:$0xff] 0.0
  $region13: #{_lambda_.1} parent=0 // pred_fallthru
    _
  loop: start=0, step=1, limit=2
  $region14: #{_lambda_.1} parent=0 // loop_pre_header
    _
  $region15: #{_lambda_.1} parent=0 // loop_header
    %s81 = sphi 0, %s85
    %p82 = scmp.ge.s32.totalorder %s81, 2
  $region16: #{_lambda_.1} parent=0 // loop_header_branch
    %84 = sbr.rel (%p82) target = $region20
  $region17: #{_lambda_.1} parent=0 // loop_body
    %s86 = smul.u32 %s81, 8
    %s87 = scalar_lea.vmem %s58, %s86
    %v88 = vld [vmem:[%s87] sm:$0xff]
    %s89 = scalar_lea.vmem %s70, %s86
    %v90 = vld [vmem:[%s89] sm:$0xff]
    %v91 = vsub.f32 %v88, %v90
    %v92 = vand.u32 2147483647, %v91
    %v93 = vld [vmem:[%s2] sm:$0xff]
    %v94 = vadd.f32 %v92, 0.0
    %v95 = vadd.f32 %v93, %v94
    %96 = vst [vmem:[%s2] sm:$0xff] %v95
  $region18: #{_lambda_.1} parent=0 // loop_footer
    %s85 = sadd.s32 1, %s81
  $region19: #{_lambda_.1} parent=0 // loop_footer_branch
    %80 = sbr.rel target = $region15
  $region20: #{_lambda_.1} parent=0 // loop_exit
    _
  // Predicated region
  $region21: #{_lambda_.1} parent=0 // pred_check
    _
  $region22: #{_lambda_.1} parent=0 // pred_check_branch
    %98 = sbr.rel (0) target = $region24
  $region23: #{_lambda_.1} parent=0 // pred_region
    _
  $region24: #{_lambda_.1} parent=0 // pred_fallthru
    _
  // Predicated region
  $region25: #{_lambda_.1} parent=0 // pred_check
    _
  $region26: #{_lambda_.1} parent=0 // pred_check_branch
    %100 = sbr.rel (0) target = $region28
  $region27: #{_lambda_.1} parent=0 // pred_region
    _
  $region28: #{_lambda_.1} parent=0 // pred_fallthru
    _

</llo_original>
